<compile_context>
chip_gen: v5e
topology: v5e:2x2
jax: 0.10.0
libtpu: 0.0.40
codegen_flags: <defaults>
</compile_context>

<pallas_src>
import functools

import jax
import jax.numpy as jnp
from jax.experimental import pallas as pl
from jax.experimental.pallas import tpu as pltpu


LANES = 128
MAX_ROW_TILE = 4096  # 4096 x 128 x 4 B = 2 MiB per f32 block


def _adv_loss_kernel(x_ref, o_ref, acc_ref, *, inv_n, num_rows, row_tile):
    i = pl.program_id(0)

    @pl.when(i == 0)
    def _():
        acc_ref[...] = jnp.zeros_like(acc_ref)

    # Math in f32 regardless of input dtype (bf16 inputs stay bf16 in HBM).
    d = x_ref[...].astype(jnp.float32) - 1.0
    contrib = d * d * 0.5

    # Mask rows past the end of the array (undefined data in a partial block).
    row_ids = jax.lax.broadcasted_iota(jnp.int32, (row_tile, LANES), 0)
    valid = (row_ids + i * row_tile) < num_rows
    acc_ref[...] += jnp.where(valid, contrib, 0.0)

    @pl.when(i == pl.num_programs(0) - 1)
    def _():
        o_ref[0, 0] = jnp.sum(acc_ref[...]) * inv_n


def adversarial_loss(fake_outputs):
    """Pallas TPU implementation of mean((fake_outputs - 1)^2 / 2)."""
    x = jnp.asarray(fake_outputs)  # keep native dtype; cast happens in-kernel
    n = x.size
    flat = x.reshape(-1)

    # Tiny tail pad only when n is not lane-aligned (pad value 1.0 -> 0 loss).
    rem = n % LANES
    if rem != 0:
        flat = jnp.pad(flat, (0, LANES - rem), constant_values=1.0)
    num_rows = flat.shape[0] // LANES
    x2d = flat.reshape(num_rows, LANES)

    # Block choice: full-extent block for small inputs (always legal), else a
    # large 8-aligned row tile with a cdiv grid + in-kernel masking.
    if num_rows <= MAX_ROW_TILE:
        row_tile = num_rows
    else:
        row_tile = MAX_ROW_TILE
    num_tiles = pl.cdiv(num_rows, row_tile)

    kernel = functools.partial(
        _adv_loss_kernel,
        inv_n=1.0 / float(n),   # python float: baked in, not a captured tracer
        num_rows=num_rows,
        row_tile=row_tile,
    )

    cost = pl.CostEstimate(
        flops=3 * n,
        transcendentals=0,
        bytes_accessed=n * x.dtype.itemsize + 4,
    )

    out = pl.pallas_call(
        kernel,
        out_shape=jax.ShapeDtypeStruct((1, 1), jnp.float32),
        grid_spec=pltpu.PrefetchScalarGridSpec(
            num_scalar_prefetch=0,
            grid=(num_tiles,),
            in_specs=[pl.BlockSpec((row_tile, LANES), lambda i: (i, 0))],
            out_specs=pl.BlockSpec(
                (1, 1), lambda i: (0, 0), memory_space=pltpu.SMEM
            ),
            scratch_shapes=[pltpu.VMEM((row_tile, LANES), jnp.float32)],
        ),
        compiler_params=pltpu.CompilerParams(
            dimension_semantics=("arbitrary",),
        ),
        cost_estimate=cost,
    )(x2d)

    # TODO(synk): on v7x (2 TensorCores) the streaming read could be sharded
    # across both cores for ~2x HBM bandwidth; kept single-core for portability.
    return out[0, 0]


if __name__ == "__main__":
    key = jax.random.PRNGKey(0)

    # Discriminator-style output, NCHW: batch=2, channels=4, spatial=16x16.
    fake_outputs = jax.random.normal(key, (2, 4, 16, 16), dtype=jnp.float32)
    loss = adversarial_loss(fake_outputs)
    jax.block_until_ready(loss)
    ref = jnp.mean((fake_outputs - 1.0) ** 2 / 2.0)
    assert jnp.allclose(loss, ref, rtol=1e-5, atol=1e-6), (loss, ref)

    # Non-lane-aligned shape exercises the tiny-tail-pad path.
    odd = jax.random.normal(jax.random.PRNGKey(1), (3, 5, 7), dtype=jnp.float32)
    loss_odd = adversarial_loss(odd)
    jax.block_until_ready(loss_odd)
    ref_odd = jnp.mean((odd - 1.0) ** 2 / 2.0)
    assert jnp.allclose(loss_odd, ref_odd, rtol=1e-5, atol=1e-6), (loss_odd, ref_odd)

    print("KERNEL_OK")
</pallas_src>

<mosaic_0001>
module attributes {stable_mosaic.version = 11 : i64} {
  func.func @_adv_loss_kernel(%arg0: i32, %arg1: memref<16x128xf32, #tpu.memory_space<vmem>>, %arg2: memref<1x1xf32, #tpu.memory_space<smem>>, %arg3: memref<16x128xf32, #tpu.memory_space<vmem>>) attributes {dimension_semantics = [#tpu.dimension_semantics<arbitrary>], iteration_bounds = array<i64: 1>, scalar_prefetch = 0 : i64, scratch_operands = 1 : i64, tpu.core_type = #tpu.core_type<tc>, window_params = [{transform_indices = @transform_0, window_bounds = array<i64: 16, 128>}, {transform_indices = @transform_1, window_bounds = array<i64: 1, 1>}]} {
    %c0_i32 = arith.constant 0 : i32
    %0 = arith.cmpi eq, %arg0, %c0_i32 : i32
    %1 = arith.extui %0 : i1 to i32
    %c0_i32_0 = arith.constant 0 : i32
    %2 = arith.cmpi ne, %1, %c0_i32_0 : i32
    scf.if %2 {
      %cst_11 = arith.constant 0.000000e+00 : f32
      %23 = vector.broadcast %cst_11 : f32 to vector<16x128xf32>
      %c0_12 = arith.constant 0 : index
      %c0_13 = arith.constant 0 : index
      %24 = vector.load %arg3[%c0_12, %c0_13] : memref<16x128xf32, #tpu.memory_space<vmem>>, vector<16x128xf32>
      tpu.vector_store %arg3[%c0_12, %c0_13], %23 {strides = array<i32>} : memref<16x128xf32, #tpu.memory_space<vmem>>, vector<16x128xf32>,
    } else {
    }
    %c0 = arith.constant 0 : index
    %c0_1 = arith.constant 0 : index
    %3 = vector.load %arg1[%c0, %c0_1] : memref<16x128xf32, #tpu.memory_space<vmem>>, vector<16x128xf32>
    %cst = arith.constant 1.000000e+00 : f32
    %4 = vector.broadcast %cst : f32 to vector<16x128xf32>
    %5 = arith.subf %3, %4 : vector<16x128xf32>
    %6 = arith.mulf %5, %5 : vector<16x128xf32>
    %cst_2 = arith.constant 5.000000e-01 : f32
    %7 = vector.broadcast %cst_2 : f32 to vector<16x128xf32>
    %8 = arith.mulf %6, %7 : vector<16x128xf32>
    %9 = tpu.iota {dimensions = array<i32: 0>} : vector<16x128xi32>
    %c16_i32 = arith.constant 16 : i32
    %10 = arith.muli %arg0, %c16_i32 : i32
    %11 = vector.broadcast %10 : i32 to vector<16x128xi32>
    %12 = arith.addi %9, %11 : vector<16x128xi32>
    %c16_i32_3 = arith.constant 16 : i32
    %13 = vector.broadcast %c16_i32_3 : i32 to vector<16x128xi32>
    %14 = arith.cmpi slt, %12, %13 : vector<16x128xi32>
    %c0_4 = arith.constant 0 : index
    %c0_5 = arith.constant 0 : index
    %15 = vector.load %arg3[%c0_4, %c0_5] : memref<16x128xf32, #tpu.memory_space<vmem>>, vector<16x128xf32>
    %cst_6 = arith.constant 0.000000e+00 : f32
    %16 = vector.broadcast %cst_6 : f32 to vector<16x128xf32>
    %17 = arith.select %14, %8, %16 : vector<16x128xi1>, vector<16x128xf32>
    %18 = arith.addf %15, %17 : vector<16x128xf32>
    %c0_7 = arith.constant 0 : index
    %c0_8 = arith.constant 0 : index
    %19 = vector.load %arg3[%c0_7, %c0_8] : memref<16x128xf32, #tpu.memory_space<vmem>>, vector<16x128xf32>
    tpu.vector_store %arg3[%c0_7, %c0_8], %18 {strides = array<i32>} : memref<16x128xf32, #tpu.memory_space<vmem>>, vector<16x128xf32>,
    %c0_i32_9 = arith.constant 0 : i32
    %20 = arith.cmpi eq, %arg0, %c0_i32_9 : i32
    %21 = arith.extui %20 : i1 to i32
    %c0_i32_10 = arith.constant 0 : i32
    %22 = arith.cmpi ne, %21, %c0_i32_10 : i32
    scf.if %22 {
      %c0_11 = arith.constant 0 : index
      %c0_12 = arith.constant 0 : index
      %23 = vector.load %arg3[%c0_11, %c0_12] : memref<16x128xf32, #tpu.memory_space<vmem>>, vector<16x128xf32>
      %24 = vector.shape_cast %23 : vector<16x128xf32> to vector<1x16x128xf32>
      %cst_13 = arith.constant dense<0.000000e+00> : vector<1xf32>
      %25 = vector.multi_reduction <add>, %24, %cst_13 [1, 2] : vector<1x16x128xf32> to vector<1xf32>
      %26 = vector.shape_cast %25 : vector<1xf32> to vector<1x1x1xf32>
      %27 = vector.extract %26[0, 0, 0] : f32 from vector<1x1x1xf32>
      %cst_14 = arith.constant 4.8828125E-4 : f32
      %28 = arith.mulf %27, %cst_14 : f32
      %c0_15 = arith.constant 0 : index
      %c0_16 = arith.constant 0 : index
      %29 = memref.load %arg2[%c0_15, %c0_16] : memref<1x1xf32, #tpu.memory_space<smem>>
      memref.store %28, %arg2[%c0_15, %c0_16] : memref<1x1xf32, #tpu.memory_space<smem>>
    } else {
    }
    return
  }
  func.func @transform_0(%arg0: i32) -> (i32, i32) {
    %c0_i32 = arith.constant 0 : i32
    %c0_i32_0 = arith.constant 0 : i32
    return %arg0, %c0_i32 : i32, i32
  }
  func.func @transform_1(%arg0: i32) -> (i32, i32) {
    %c0_i32 = arith.constant 0 : i32
    %c0_i32_0 = arith.constant 0 : i32
    %c0_i32_1 = arith.constant 0 : i32
    return %c0_i32, %c0_i32_0 : i32, i32
  }
}

</mosaic_0001>

<llo_original>
// kernel: tpu_custom_call.1
$region0: #{tpu_custom_call.1}
  #allocation0 [shape = 'u32[]', space=smem, size = 0x4, offset = 0x4, fixed_abs, tag = 'smem constant byte address 0x4 - core index']
  #allocation1 [shape = 'u32[72,128]{1,0:T(1,128)}', space=vmem, size = 0x9000, scoped, tag = 'internal scratch']
  #allocation2 [shape = 'f32[16,128]{1,0:T(8,128)}', space=vmem, size = 0x2000, scoped, tag = 'scratch operand']
  %s0 = inlined_call_operand.hbm [shape: f32[16,128], index: 0, kind: input, shape index: {}]
  %s1 = inlined_call_operand.hbm [shape: f32[1,1], index: 1, kind: output, shape index: {}]
  %s2 = sld [smem:[#allocation0]]
  $region26: #{tpu_custom_call.1} parent=0
    _
  %s4 = ssub.s32 1, %s2
  %s5 = scalar_select 0, %s4, %s2
  $region1: #{tpu_custom_call.1} parent=0
    #allocation3 [shape = 'u8[8192]{0}', space=vmem, size = 0x2000, scoped, tag = 'input window, operand 0, single buffered']
    #allocation4 [shape = 's32[1]{0}', space=sflag, size = 0x4, scoped, tag = 'scoped memory for tpu_custom_call.1']
    #allocation5 [shape = 's32[1]{0}', space=sflag, size = 0x4, scoped, tag = 'scoped memory for tpu_custom_call.1']
    #allocation6 [shape = 'u8[512]{0}', space=smem, size = 0x200, scoped, tag = 'output window, operand 0, single buffered']
    %6 = vsyncpa [#allocation4], 0
    %7 = vsyncpa [#allocation5], 0
    // Predicated region
    $region2: #{tpu_custom_call.1} parent=1 // pred_check
      _
    $region3: #{tpu_custom_call.1} parent=1 // pred_check_branch
      %9 = sbr.rel (0) target = $region5
    $region4: #{tpu_custom_call.1} parent=1 // pred_region
      %11 = vsyncadd [#allocation4], 0
      %s12 = sshll.u32 %s0, 4
      %s13 = int_to_ptr.hbm [resolvable:$true] %s12
      %s14 = sshll.u32 [#allocation3], 4
      %s15 = int_to_ptr.vmem [resolvable:$true] %s14
      %20 = dma.hbm_to_vmem [thread:$0]  %s13, 256, %s15, [#allocation4], 128, 128, 8
    $region5: #{tpu_custom_call.1} parent=1 // pred_fallthru
      _
    // Predicated region
    $region6: #{tpu_custom_call.1} parent=1 // pred_check
      _
    $region7: #{tpu_custom_call.1} parent=1 // pred_check_branch
      %22 = sbr.rel (0) target = $region9
    $region8: #{tpu_custom_call.1} parent=1 // pred_region
      %24 = dma.done [#allocation4], 256
    $region9: #{tpu_custom_call.1} parent=1 // pred_fallthru
      _
    %p25 = scmp.eq.s32.totalorder 0, 0
    // Predicated region
    $region10: #{tpu_custom_call.1} parent=1 // pred_check
      %p26 = pneg %p25
    $region11: #{tpu_custom_call.1} parent=1 // pred_check_branch
      %28 = sbr.rel (%p26) target = $region13
    $region12: #{tpu_custom_call.1} parent=1 // pred_region
      %29 = vst [vmem:[#allocation2] sm:$0xff] 0.0
      %30 = vst [vmem:[#allocation2 + $0x8] sm:$0xff] 0.0
    $region13: #{tpu_custom_call.1} parent=1 // pred_fallthru
      _
    %v31 = vld [vmem:[#allocation3] sm:$0xff]
    %v32 = vld [vmem:[#allocation3 + $0x8] sm:$0xff]
    %v33 = vsub.f32 %v31, 1.0
    %v34 = vsub.f32 %v32, 1.0
    %v35 = vmul.f32 %v33, %v33
    %v36 = vmul.f32 %v34, %v34
    %v37 = vmul.f32 %v35, 0.5
    %v38 = vmul.f32 %v36, 0.5
    %v39 = vlaneseq
    %v40 = vshrl.u32 %v39, 7
    %v41 = vadd.s32 %v40, 8
    %s42 = smul.u32 0, 16
    %v43 = vstv %s42
    %v44 = vadd.s32 %v40, %v43
    %v45 = vadd.s32 %v41, %v43
    %vm46 = vcmp.lt.s32.totalorder %v44, 16
    %vm47 = vcmp.lt.s32.totalorder %v45, 16
    %v48 = vld [vmem:[#allocation2] sm:$0xff]
    %v49 = vld [vmem:[#allocation2 + $0x8] sm:$0xff]
    %v50 = vsel %vm46, %v37, 0.0
    %v51 = vsel %vm47, %v38, 0.0
    %v52 = vadd.f32 %v48, %v50
    %v53 = vadd.f32 %v49, %v51
    %54 = vst [vmem:[#allocation2] sm:$0xff] %v52
    %55 = vst [vmem:[#allocation2 + $0x8] sm:$0xff] %v53
    // Predicated region
    $region14: #{tpu_custom_call.1} parent=1 // pred_check
      %p56 = pneg %p25
    $region15: #{tpu_custom_call.1} parent=1 // pred_check_branch
      %58 = sbr.rel (%p56) target = $region17
    $region16: #{tpu_custom_call.1} parent=1 // pred_region
      %v59 = vld [vmem:[#allocation2] sm:$0xff]
      %v60 = vld [vmem:[#allocation2 + $0x8] sm:$0xff]
      %v61 = vadd.f32 %v59, %v60
      %62 = vadd.xlane.f32.xlu0 %v61
      %v63 = vpop.xlane.xlu0 %62
      %v64 = vrot.slane %v63, 4
      %v65 = vadd.f32 %v63, %v64
      %v66 = vrot.slane %v65, 2
      %v67 = vadd.f32 %v65, %v66
      %v68 = vrot.slane %v67, 1
      %v69 = vadd.f32 %v67, %v68
      %s70 = vtos %v69
      %s71 = smul.f32 %s70, 0.00048828125
      %s72 = scalar_lea.smem [#allocation6], 0
      %73 = sst [smem:[%s72]] %s71
    $region17: #{tpu_custom_call.1} parent=1 // pred_fallthru
      _
    // Predicated region
    $region18: #{tpu_custom_call.1} parent=1 // pred_check
      _
    $region19: #{tpu_custom_call.1} parent=1 // pred_check_branch
      %75 = sbr.rel (0) target = $region21
    $region20: #{tpu_custom_call.1} parent=1 // pred_region
      %77 = vsyncadd [#allocation5], 0
      %s79 = sshll.u32 %s1, 4
      %s80 = int_to_ptr.hbm [resolvable:$true] %s79
      %82 = dma.smem_to_hbm [#allocation6], 16, %s80, [#allocation5]
    $region21: #{tpu_custom_call.1} parent=1 // pred_fallthru
      _
    // Predicated region
    $region22: #{tpu_custom_call.1} parent=1 // pred_check
      _
    $region23: #{tpu_custom_call.1} parent=1 // pred_check_branch
      %84 = sbr.rel (0) target = $region25
    $region24: #{tpu_custom_call.1} parent=1 // pred_region
      %86 = dma.done [#allocation5], 16
    $region25: #{tpu_custom_call.1} parent=1 // pred_fallthru
      _
    %87 = sfence
    %88 = vsyncpa [#allocation4], 1
    %89 = vsyncpa [#allocation5], 1

</llo_original>
